<compile_context>
chip_gen: v7x
topology: tpu7x:2x2x1
jax: 0.10.0
libtpu: 0.0.40
codegen_flags: <defaults>
</compile_context>

<pallas_src>
import functools

import jax
import jax.numpy as jnp
from jax.experimental import pallas as pl
from jax.experimental.pallas import tpu as pltpu


def _round_up(x, m):
    return ((x + m - 1) // m) * m


def _tpu_flags():
    """Best-effort chip detection (trace-time, outside jit). Falls back to safe defaults."""
    try:
        kind = jax.devices()[0].device_kind.lower()
    except Exception:
        return dict(fuse_layer2=True, multicore_split=False)
    old_mxu = any(v in kind for v in ("v2", "v3", "v4", "v5"))  # 128x128 MXU generations
    return dict(fuse_layer2=not old_mxu,        # block-diag 256x256 layer-2 only on v6e/v7x
                multicore_split=("7" in kind))  # 2 TensorCores per chip only on v7x


def prepare_params(params, *, compute_dtype=jnp.bfloat16, fuse_layer2=True):
    """One-time weight packing (hoisted out of the per-call wrapper).

    w1 = [tw1 | pw1]  (F, 2L)    b1 = [tb1 | pb1]  (1, 2L)  f32
    fused:   w2 = blockdiag(tw2, pw2)  (2L, 2L)
    unfused: tw2 (L, L), pw2 (L, L)                b2 = [tb2 | pb2]  (1, 2L)  f32
    w3 = tw3 (L, L)                                b3 = tb3          (1, L)   f32
    """
    f32 = jnp.float32
    L = params["tw1"].shape[1]
    packed = dict(
        w1=jnp.concatenate([params["tw1"], params["pw1"]], axis=1).astype(compute_dtype),
        b1=jnp.concatenate([params["tb1"], params["pb1"]], axis=1).astype(f32),
        b2=jnp.concatenate([params["tb2"], params["pb2"]], axis=1).astype(f32),
        w3=params["tw3"].astype(compute_dtype),
        b3=params["tb3"].astype(f32),
    )
    if fuse_layer2:
        zero = jnp.zeros((L, L), params["tw2"].dtype)
        packed["w2"] = jnp.block([[params["tw2"], zero],
                                  [zero, params["pw2"]]]).astype(compute_dtype)
    else:
        packed["tw2"] = params["tw2"].astype(compute_dtype)
        packed["pw2"] = params["pw2"].astype(compute_dtype)
    return packed


def _noveld_kernel(curr_ref, next_ref, w1_ref, b1_ref, *rest,
                   latents_dim, compute_dtype, fuse_layer2):
    """One batch tile: both heads, for curr and next embeddings.

    Inputs after (curr, next, w1, b1):
      fused:   w2, b2, w3, b3,            then outputs ct, cp, nt, np
      unfused: tw2, pw2, b2, w3, b3,      then outputs ct, cp, nt, np
    """
    L = latents_dim
    if fuse_layer2:
        (w2_ref, b2_ref, w3_ref, b3_ref,
         ct_ref, cp_ref, nt_ref, np_ref) = rest
    else:
        (tw2_ref, pw2_ref, b2_ref, w3_ref, b3_ref,
         ct_ref, cp_ref, nt_ref, np_ref) = rest

    def heads(x_ref, tgt_ref, prd_ref):
        x = x_ref[...].astype(compute_dtype)                       # (tile, F)

        # ---- layer 1 (fused target + predictor first Linear) + ReLU ----
        hg = jnp.dot(x, w1_ref[...], preferred_element_type=jnp.float32) + b1_ref[...]
        hg = jnp.maximum(hg, 0.0)                                   # (tile, 2L) f32
        hgc = hg.astype(compute_dtype)

        # ---- layer 2 ----
        if fuse_layer2:
            # block-diagonal (2L, 2L): off-diagonal zero blocks contribute exact zeros,
            # identical to two separate (tile, L)@(L, L) matmuls; fills the 256-wide MXU.
            hg2 = jnp.dot(hgc, w2_ref[...],
                          preferred_element_type=jnp.float32) + b2_ref[...]
            h2 = jnp.maximum(hg2[:, :L], 0.0)   # target branch gets a ReLU
            prd = hg2[:, L:]                    # predictor output (no final activation)
        else:
            # v5e (128x128 MXU): two split 128^3 matmuls are half the MXU pushes.
            h2 = jnp.maximum(
                jnp.dot(hgc[:, :L], tw2_ref[...],
                        preferred_element_type=jnp.float32) + b2_ref[:, :L], 0.0)
            prd = (jnp.dot(hgc[:, L:], pw2_ref[...],
                           preferred_element_type=jnp.float32) + b2_ref[:, L:])

        # ---- layer 3 (target head only) ----
        tgt = jnp.dot(h2.astype(compute_dtype), w3_ref[...],
                      preferred_element_type=jnp.float32) + b3_ref[...]

        # Direct lane-dense stores (no in-kernel concatenate, no extra VMEM temp).
        tgt_ref[...] = tgt.astype(tgt_ref.dtype)
        prd_ref[...] = prd.astype(prd_ref.dtype)

    heads(curr_ref, ct_ref, cp_ref)
    heads(next_ref, nt_ref, np_ref)


def noveld_output_heads(curr_emb, next_emb, packed, *, batch_tile=512,
                        compute_dtype=jnp.bfloat16, fuse_layer2=True,
                        out_dtype=None, multicore_split=False):
    """NovelDOutputHeads.forward: both embeddings through the shared RND heads.

    Returns (curr_tgt, curr_prd, next_tgt, next_prd), each (B, L).
    """
    B, F = curr_emb.shape
    assert next_emb.shape == (B, F)
    L = packed["w3"].shape[0]
    out_dtype = curr_emb.dtype if out_dtype is None else out_dtype

    # --- tile selection: multiple of 16 rows (native bf16 sublane packing), <= batch_tile.
    ALIGN = 16
    Bp16 = _round_up(B, ALIGN)
    tile = min(_round_up(batch_tile, ALIGN), Bp16)
    # Only force >=2 grid steps on 2-TensorCore chips (v7x), and only when each
    # half-tile is still reasonably large (>= 256 rows). On single-TC chips the grid is
    # a sequential loop, so splitting a single-tile batch is pure overhead.
    if multicore_split and Bp16 // tile < 2 and Bp16 >= 2 * 256:
        tile = _round_up((Bp16 + 1) // 2, ALIGN)
    Mp = _round_up(B, tile)

    def pad(x):
        return jnp.pad(x, ((0, Mp - B), (0, 0))) if Mp != B else x
    curr = pad(curr_emb)
    nxt = pad(next_emb)

    if fuse_layer2:
        weights = (packed["w1"], packed["b1"], packed["w2"], packed["b2"],
                   packed["w3"], packed["b3"])
        w_shapes = [(F, 2 * L), (1, 2 * L), (2 * L, 2 * L), (1, 2 * L), (L, L), (1, L)]
    else:
        weights = (packed["w1"], packed["b1"], packed["tw2"], packed["pw2"],
                   packed["b2"], packed["w3"], packed["b3"])
        w_shapes = [(F, 2 * L), (1, 2 * L), (L, L), (L, L), (1, 2 * L), (L, L), (1, L)]

    kernel = functools.partial(_noveld_kernel, latents_dim=L,
                               compute_dtype=compute_dtype, fuse_layer2=fuse_layer2)

    grid = (Mp // tile,)
    in_specs = ([pl.BlockSpec((tile, F), lambda i: (i, 0)),        # curr: tiled over batch
                 pl.BlockSpec((tile, F), lambda i: (i, 0))] +      # next: tiled over batch
                [pl.BlockSpec(s, lambda i: (0, 0)) for s in w_shapes])  # weights resident
    out_spec = pl.BlockSpec((tile, L), lambda i: (i, 0))
    out_struct = jax.ShapeDtypeStruct((Mp, L), out_dtype)

    outs = pl.pallas_call(
        kernel,
        out_shape=(out_struct,) * 4,
        grid_spec=pltpu.PrefetchScalarGridSpec(
            num_scalar_prefetch=0,
            grid=grid,
            in_specs=in_specs,
            out_specs=(out_spec,) * 4,
        ),
        compiler_params=pltpu.CompilerParams(
            dimension_semantics=("parallel",),
            vmem_limit_bytes=32 * 1024 * 1024,
        ),
    )(curr, nxt, *weights)

    if Mp != B:
        outs = tuple(o[:B] for o in outs)
    return outs  # (curr_tgt, curr_prd, next_tgt, next_prd)


def init_params(key, features_dim, latents_dim, dtype=jnp.float32):
    """Deterministic init mimicking nn.Linear default (uniform +-1/sqrt(fan_in)).

    Weights stored as (in_dim, out_dim) (transposed vs. PyTorch); biases as (1, out).
    The target head is frozen in PyTorch (requires_grad=False) — training-time only;
    forward math is identical.
    """
    def linear(k, fan_in, fan_out):
        kw, kb = jax.random.split(k)
        bound = 1.0 / jnp.sqrt(fan_in)
        w = jax.random.uniform(kw, (fan_in, fan_out), dtype, -bound, bound)
        b = jax.random.uniform(kb, (1, fan_out), dtype, -bound, bound)
        return w, b

    keys = jax.random.split(key, 5)
    tw1, tb1 = linear(keys[0], features_dim, latents_dim)   # target: F->L->L->L
    tw2, tb2 = linear(keys[1], latents_dim, latents_dim)
    tw3, tb3 = linear(keys[2], latents_dim, latents_dim)
    pw1, pb1 = linear(keys[3], features_dim, latents_dim)   # predictor: F->L->L
    pw2, pb2 = linear(keys[4], latents_dim, latents_dim)
    return dict(tw1=tw1, tb1=tb1, tw2=tw2, tb2=tb2, tw3=tw3, tb3=tb3,
                pw1=pw1, pb1=pb1, pw2=pw2, pb2=pb2)


def _reference(curr, nxt, p):
    """Pure-JAX f32 reference matching the PyTorch forward."""
    def target(x):
        h = jnp.maximum(x @ p["tw1"] + p["tb1"], 0.0)
        h = jnp.maximum(h @ p["tw2"] + p["tb2"], 0.0)
        return h @ p["tw3"] + p["tb3"]

    def predictor(x):
        g = jnp.maximum(x @ p["pw1"] + p["pb1"], 0.0)
        return g @ p["pw2"] + p["pb2"]

    return target(curr), predictor(curr), target(nxt), predictor(nxt)


if __name__ == "__main__":
    features_dim = 32
    latents_dim = 128
    batch = 8

    key = jax.random.PRNGKey(0)
    k_params, k_curr, k_next = jax.random.split(key, 3)

    params = init_params(k_params, features_dim, latents_dim, dtype=jnp.float32)
    curr_emb = jax.random.normal(k_curr, (batch, features_dim), jnp.float32)
    next_emb = jax.random.normal(k_next, (batch, features_dim), jnp.float32)

    ref = _reference(curr_emb, next_emb, params)
    flags = _tpu_flags()  # fuse_layer2 on v6e/v7x, split-for-megacore only on v7x

    # --- f32 compute path: validates exact forward semantics ---
    packed_f32 = prepare_params(params, compute_dtype=jnp.float32,
                                fuse_layer2=flags["fuse_layer2"])
    fn_f32 = jax.jit(functools.partial(noveld_output_heads,
                                       compute_dtype=jnp.float32,
                                       fuse_layer2=flags["fuse_layer2"],
                                       multicore_split=flags["multicore_split"],
                                       out_dtype=jnp.float32))
    outs_f32 = fn_f32(curr_emb, next_emb, packed_f32)
    jax.block_until_ready(outs_f32)
    for got, want in zip(outs_f32, ref):
        assert got.shape == (batch, latents_dim)
        assert jnp.allclose(got, want, atol=1e-4, rtol=1e-4), "f32 path mismatch"

    # --- bf16 operands / f32 accumulation: the fast path (looser tolerance vs f32 ref) ---
    packed_bf16 = prepare_params(params, compute_dtype=jnp.bfloat16,
                                 fuse_layer2=flags["fuse_layer2"])
    fn_bf16 = jax.jit(functools.partial(noveld_output_heads,
                                        compute_dtype=jnp.bfloat16,
                                        fuse_layer2=flags["fuse_layer2"],
                                        multicore_split=flags["multicore_split"],
                                        out_dtype=jnp.float32))
    outs_bf16 = fn_bf16(curr_emb, next_emb, packed_bf16)
    jax.block_until_ready(outs_bf16)
    for got, want in zip(outs_bf16, ref):
        assert got.shape == (batch, latents_dim)
        assert jnp.allclose(got, want, atol=5e-2, rtol=5e-2), "bf16 path mismatch"

    print("KERNEL_OK")
</pallas_src>

<mosaic_0001>
module attributes {stable_mosaic.version = 11 : i64} {
  func.func @_noveld_kernel(%arg0: i32, %arg1: memref<16x32xf32, #tpu.memory_space<vmem>>, %arg2: memref<16x32xf32, #tpu.memory_space<vmem>>, %arg3: memref<32x256xf32, #tpu.memory_space<vmem>>, %arg4: memref<1x256xf32, #tpu.memory_space<vmem>>, %arg5: memref<256x256xf32, #tpu.memory_space<vmem>>, %arg6: memref<1x256xf32, #tpu.memory_space<vmem>>, %arg7: memref<128x128xf32, #tpu.memory_space<vmem>>, %arg8: memref<1x128xf32, #tpu.memory_space<vmem>>, %arg9: memref<16x128xf32, #tpu.memory_space<vmem>>, %arg10: memref<16x128xf32, #tpu.memory_space<vmem>>, %arg11: memref<16x128xf32, #tpu.memory_space<vmem>>, %arg12: memref<16x128xf32, #tpu.memory_space<vmem>>) attributes {dimension_semantics = [#tpu.dimension_semantics<parallel>], iteration_bounds = array<i64: 1>, scalar_prefetch = 0 : i64, scratch_operands = 0 : i64, tpu.core_type = #tpu.core_type<tc>, window_params = [{transform_indices = @transform_0, window_bounds = array<i64: 16, 32>}, {transform_indices = @transform_1, window_bounds = array<i64: 16, 32>}, {pipeline_mode = #tpu.pipeline_mode<synchronous>, transform_indices = @transform_2, window_bounds = array<i64: 32, 256>}, {pipeline_mode = #tpu.pipeline_mode<synchronous>, transform_indices = @transform_3, window_bounds = array<i64: 1, 256>}, {pipeline_mode = #tpu.pipeline_mode<synchronous>, transform_indices = @transform_4, window_bounds = array<i64: 256, 256>}, {pipeline_mode = #tpu.pipeline_mode<synchronous>, transform_indices = @transform_5, window_bounds = array<i64: 1, 256>}, {pipeline_mode = #tpu.pipeline_mode<synchronous>, transform_indices = @transform_6, window_bounds = array<i64: 128, 128>}, {pipeline_mode = #tpu.pipeline_mode<synchronous>, transform_indices = @transform_7, window_bounds = array<i64: 1, 128>}, {transform_indices = @transform_8, window_bounds = array<i64: 16, 128>}, {transform_indices = @transform_9, window_bounds = array<i64: 16, 128>}, {transform_indices = @transform_10, window_bounds = array<i64: 16, 128>}, {transform_indices = @transform_11, window_bounds = array<i64: 16, 128>}]} {
    %c0 = arith.constant 0 : index
    %c0_0 = arith.constant 0 : index
    %0 = vector.load %arg1[%c0, %c0_0] : memref<16x32xf32, #tpu.memory_space<vmem>>, vector<16x32xf32>
    %c0_1 = arith.constant 0 : index
    %c0_2 = arith.constant 0 : index
    %1 = vector.load %arg3[%c0_1, %c0_2] : memref<32x256xf32, #tpu.memory_space<vmem>>, vector<32x256xf32>
    %cst = arith.constant dense<0.000000e+00> : vector<16x256xf32>
    %2 = tpu.matmul %0, %1, %cst {dimension_numbers = #tpu.dot_dimension_numbers<[1], [0], [0], [1], [0, 0, 1, 1], [], []>} : vector<16x32xf32>, vector<32x256xf32>, vector<16x256xf32> -> vector<16x256xf32>
    %c0_3 = arith.constant 0 : index
    %c0_4 = arith.constant 0 : index
    %3 = vector.load %arg4[%c0_3, %c0_4] : memref<1x256xf32, #tpu.memory_space<vmem>>, vector<1x256xf32>
    %4 = vector.broadcast %3 : vector<1x256xf32> to vector<16x256xf32>
    %5 = arith.addf %2, %4 : vector<16x256xf32>
    %cst_5 = arith.constant 0.000000e+00 : f32
    %6 = vector.broadcast %cst_5 : f32 to vector<16x256xf32>
    %7 = arith.maximumf %5, %6 : vector<16x256xf32>
    %c0_6 = arith.constant 0 : index
    %c0_7 = arith.constant 0 : index
    %8 = vector.load %arg5[%c0_6, %c0_7] : memref<256x256xf32, #tpu.memory_space<vmem>>, vector<256x256xf32>
    %cst_8 = arith.constant dense<0.000000e+00> : vector<16x256xf32>
    %9 = tpu.matmul %7, %8, %cst_8 {dimension_numbers = #tpu.dot_dimension_numbers<[1], [0], [0], [1], [0, 0, 1, 1], [], []>} : vector<16x256xf32>, vector<256x256xf32>, vector<16x256xf32> -> vector<16x256xf32>
    %c0_9 = arith.constant 0 : index
    %c0_10 = arith.constant 0 : index
    %10 = vector.load %arg6[%c0_9, %c0_10] : memref<1x256xf32, #tpu.memory_space<vmem>>, vector<1x256xf32>
    %11 = vector.broadcast %10 : vector<1x256xf32> to vector<16x256xf32>
    %12 = arith.addf %9, %11 : vector<16x256xf32>
    %13 = vector.extract_strided_slice %12 {offsets = [0, 0], sizes = [16, 128], strides = [1, 1]} : vector<16x256xf32> to vector<16x128xf32>
    %cst_11 = arith.constant 0.000000e+00 : f32
    %14 = vector.broadcast %cst_11 : f32 to vector<16x128xf32>
    %15 = arith.maximumf %13, %14 : vector<16x128xf32>
    %16 = vector.extract_strided_slice %12 {offsets = [0, 128], sizes = [16, 128], strides = [1, 1]} : vector<16x256xf32> to vector<16x128xf32>
    %c0_12 = arith.constant 0 : index
    %c0_13 = arith.constant 0 : index
    %17 = vector.load %arg7[%c0_12, %c0_13] : memref<128x128xf32, #tpu.memory_space<vmem>>, vector<128x128xf32>
    %cst_14 = arith.constant dense<0.000000e+00> : vector<16x128xf32>
    %18 = tpu.matmul %15, %17, %cst_14 {dimension_numbers = #tpu.dot_dimension_numbers<[1], [0], [0], [1], [0, 0, 1, 1], [], []>} : vector<16x128xf32>, vector<128x128xf32>, vector<16x128xf32> -> vector<16x128xf32>
    %c0_15 = arith.constant 0 : index
    %c0_16 = arith.constant 0 : index
    %19 = vector.load %arg8[%c0_15, %c0_16] : memref<1x128xf32, #tpu.memory_space<vmem>>, vector<1x128xf32>
    %20 = vector.broadcast %19 : vector<1x128xf32> to vector<16x128xf32>
    %21 = arith.addf %18, %20 : vector<16x128xf32>
    %c0_17 = arith.constant 0 : index
    %c0_18 = arith.constant 0 : index
    %22 = vector.load %arg9[%c0_17, %c0_18] : memref<16x128xf32, #tpu.memory_space<vmem>>, vector<16x128xf32>
    tpu.vector_store %arg9[%c0_17, %c0_18], %21 {strides = array<i32>} : memref<16x128xf32, #tpu.memory_space<vmem>>, vector<16x128xf32>,
    %c0_19 = arith.constant 0 : index
    %c0_20 = arith.constant 0 : index
    %23 = vector.load %arg10[%c0_19, %c0_20] : memref<16x128xf32, #tpu.memory_space<vmem>>, vector<16x128xf32>
    tpu.vector_store %arg10[%c0_19, %c0_20], %16 {strides = array<i32>} : memref<16x128xf32, #tpu.memory_space<vmem>>, vector<16x128xf32>,
    %c0_21 = arith.constant 0 : index
    %c0_22 = arith.constant 0 : index
    %24 = vector.load %arg2[%c0_21, %c0_22] : memref<16x32xf32, #tpu.memory_space<vmem>>, vector<16x32xf32>
    %c0_23 = arith.constant 0 : index
    %c0_24 = arith.constant 0 : index
    %25 = vector.load %arg3[%c0_23, %c0_24] : memref<32x256xf32, #tpu.memory_space<vmem>>, vector<32x256xf32>
    %cst_25 = arith.constant dense<0.000000e+00> : vector<16x256xf32>
    %26 = tpu.matmul %24, %25, %cst_25 {dimension_numbers = #tpu.dot_dimension_numbers<[1], [0], [0], [1], [0, 0, 1, 1], [], []>} : vector<16x32xf32>, vector<32x256xf32>, vector<16x256xf32> -> vector<16x256xf32>
    %c0_26 = arith.constant 0 : index
    %c0_27 = arith.constant 0 : index
    %27 = vector.load %arg4[%c0_26, %c0_27] : memref<1x256xf32, #tpu.memory_space<vmem>>, vector<1x256xf32>
    %28 = vector.broadcast %27 : vector<1x256xf32> to vector<16x256xf32>
    %29 = arith.addf %26, %28 : vector<16x256xf32>
    %cst_28 = arith.constant 0.000000e+00 : f32
    %30 = vector.broadcast %cst_28 : f32 to vector<16x256xf32>
    %31 = arith.maximumf %29, %30 : vector<16x256xf32>
    %c0_29 = arith.constant 0 : index
    %c0_30 = arith.constant 0 : index
    %32 = vector.load %arg5[%c0_29, %c0_30] : memref<256x256xf32, #tpu.memory_space<vmem>>, vector<256x256xf32>
    %cst_31 = arith.constant dense<0.000000e+00> : vector<16x256xf32>
    %33 = tpu.matmul %31, %32, %cst_31 {dimension_numbers = #tpu.dot_dimension_numbers<[1], [0], [0], [1], [0, 0, 1, 1], [], []>} : vector<16x256xf32>, vector<256x256xf32>, vector<16x256xf32> -> vector<16x256xf32>
    %c0_32 = arith.constant 0 : index
    %c0_33 = arith.constant 0 : index
    %34 = vector.load %arg6[%c0_32, %c0_33] : memref<1x256xf32, #tpu.memory_space<vmem>>, vector<1x256xf32>
    %35 = vector.broadcast %34 : vector<1x256xf32> to vector<16x256xf32>
    %36 = arith.addf %33, %35 : vector<16x256xf32>
    %37 = vector.extract_strided_slice %36 {offsets = [0, 0], sizes = [16, 128], strides = [1, 1]} : vector<16x256xf32> to vector<16x128xf32>
    %cst_34 = arith.constant 0.000000e+00 : f32
    %38 = vector.broadcast %cst_34 : f32 to vector<16x128xf32>
    %39 = arith.maximumf %37, %38 : vector<16x128xf32>
    %40 = vector.extract_strided_slice %36 {offsets = [0, 128], sizes = [16, 128], strides = [1, 1]} : vector<16x256xf32> to vector<16x128xf32>
    %c0_35 = arith.constant 0 : index
    %c0_36 = arith.constant 0 : index
    %41 = vector.load %arg7[%c0_35, %c0_36] : memref<128x128xf32, #tpu.memory_space<vmem>>, vector<128x128xf32>
    %cst_37 = arith.constant dense<0.000000e+00> : vector<16x128xf32>
    %42 = tpu.matmul %39, %41, %cst_37 {dimension_numbers = #tpu.dot_dimension_numbers<[1], [0], [0], [1], [0, 0, 1, 1], [], []>} : vector<16x128xf32>, vector<128x128xf32>, vector<16x128xf32> -> vector<16x128xf32>
    %c0_38 = arith.constant 0 : index
    %c0_39 = arith.constant 0 : index
    %43 = vector.load %arg8[%c0_38, %c0_39] : memref<1x128xf32, #tpu.memory_space<vmem>>, vector<1x128xf32>
    %44 = vector.broadcast %43 : vector<1x128xf32> to vector<16x128xf32>
    %45 = arith.addf %42, %44 : vector<16x128xf32>
    %c0_40 = arith.constant 0 : index
    %c0_41 = arith.constant 0 : index
    %46 = vector.load %arg11[%c0_40, %c0_41] : memref<16x128xf32, #tpu.memory_space<vmem>>, vector<16x128xf32>
    tpu.vector_store %arg11[%c0_40, %c0_41], %45 {strides = array<i32>} : memref<16x128xf32, #tpu.memory_space<vmem>>, vector<16x128xf32>,
    %c0_42 = arith.constant 0 : index
    %c0_43 = arith.constant 0 : index
    %47 = vector.load %arg12[%c0_42, %c0_43] : memref<16x128xf32, #tpu.memory_space<vmem>>, vector<16x128xf32>
    tpu.vector_store %arg12[%c0_42, %c0_43], %40 {strides = array<i32>} : memref<16x128xf32, #tpu.memory_space<vmem>>, vector<16x128xf32>,
    return
  }
  func.func @transform_0(%arg0: i32) -> (i32, i32) {
    %c0_i32 = arith.constant 0 : i32
    %c0_i32_0 = arith.constant 0 : i32
    return %arg0, %c0_i32 : i32, i32
  }
  func.func @transform_1(%arg0: i32) -> (i32, i32) {
    %c0_i32 = arith.constant 0 : i32
    %c0_i32_0 = arith.constant 0 : i32
    return %arg0, %c0_i32 : i32, i32
  }
  func.func @transform_2(%arg0: i32) -> (i32, i32) {
    %c0_i32 = arith.constant 0 : i32
    %c0_i32_0 = arith.constant 0 : i32
    %c0_i32_1 = arith.constant 0 : i32
    return %c0_i32, %c0_i32_0 : i32, i32
  }
  func.func @transform_3(%arg0: i32) -> (i32, i32) {
    %c0_i32 = arith.constant 0 : i32
    %c0_i32_0 = arith.constant 0 : i32
    %c0_i32_1 = arith.constant 0 : i32
    return %c0_i32, %c0_i32_0 : i32, i32
  }
  func.func @transform_4(%arg0: i32) -> (i32, i32) {
    %c0_i32 = arith.constant 0 : i32
    %c0_i32_0 = arith.constant 0 : i32
    %c0_i32_1 = arith.constant 0 : i32
    return %c0_i32, %c0_i32_0 : i32, i32
  }
  func.func @transform_5(%arg0: i32) -> (i32, i32) {
    %c0_i32 = arith.constant 0 : i32
    %c0_i32_0 = arith.constant 0 : i32
    %c0_i32_1 = arith.constant 0 : i32
    return %c0_i32, %c0_i32_0 : i32, i32
  }
  func.func @transform_6(%arg0: i32) -> (i32, i32) {
    %c0_i32 = arith.constant 0 : i32
    %c0_i32_0 = arith.constant 0 : i32
    %c0_i32_1 = arith.constant 0 : i32
    return %c0_i32, %c0_i32_0 : i32, i32
  }
  func.func @transform_7(%arg0: i32) -> (i32, i32) {
    %c0_i32 = arith.constant 0 : i32
    %c0_i32_0 = arith.constant 0 : i32
    %c0_i32_1 = arith.constant 0 : i32
    return %c0_i32, %c0_i32_0 : i32, i32
  }
  func.func @transform_8(%arg0: i32) -> (i32, i32) {
    %c0_i32 = arith.constant 0 : i32
    %c0_i32_0 = arith.constant 0 : i32
    return %arg0, %c0_i32 : i32, i32
  }
  func.func @transform_9(%arg0: i32) -> (i32, i32) {
    %c0_i32 = arith.constant 0 : i32
    %c0_i32_0 = arith.constant 0 : i32
    return %arg0, %c0_i32 : i32, i32
  }
  func.func @transform_10(%arg0: i32) -> (i32, i32) {
    %c0_i32 = arith.constant 0 : i32
    %c0_i32_0 = arith.constant 0 : i32
    return %arg0, %c0_i32 : i32, i32
  }
  func.func @transform_11(%arg0: i32) -> (i32, i32) {
    %c0_i32 = arith.constant 0 : i32
    %c0_i32_0 = arith.constant 0 : i32
    return %arg0, %c0_i32 : i32, i32
  }
}

</mosaic_0001>

<llo_original>
// kernel: noveld_output_heads.1
$region0: #{noveld_output_heads.1}
  #allocation0 [shape = 'u32[]', space=smem, size = 0x4, offset = 0x4, fixed_abs, tag = 'smem constant byte address 0x4 - core index']
  #allocation1 [shape = 'u32[144,128]{1,0:T(1,128)}', space=vmem, size = 0x12000, scoped, tag = 'internal scratch']
  %s0 = inlined_call_operand.vmem [shape: f32[16,32], index: 0, kind: input, shape index: {}]
  %s1 = inlined_call_operand.vmem [shape: f32[16,32], index: 1, kind: input, shape index: {}]
  %s2 = inlined_call_operand.vmem [shape: f32[32,256], index: 2, kind: input, shape index: {}]
  %s3 = inlined_call_operand.vmem [shape: f32[1,256], index: 3, kind: input, shape index: {}]
  %s4 = inlined_call_operand.hbm [shape: f32[256,256], index: 4, kind: input, shape index: {}]
  %s5 = inlined_call_operand.vmem [shape: f32[1,256], index: 5, kind: input, shape index: {}]
  %s6 = inlined_call_operand.hbm [shape: f32[128,128], index: 6, kind: input, shape index: {}]
  %s7 = inlined_call_operand.hbm [shape: f32[1,128], index: 7, kind: input, shape index: {}]
  %s8 = inlined_call_operand.vmem [shape: f32[16,128], index: 8, kind: output, shape index: {0}]
  %s9 = inlined_call_operand.vmem [shape: f32[16,128], index: 9, kind: output, shape index: {1}]
  %s10 = inlined_call_operand.vmem [shape: f32[16,128], index: 10, kind: output, shape index: {2}]
  %s11 = inlined_call_operand.vmem [shape: f32[16,128], index: 11, kind: output, shape index: {3}]
  %12 = xla_tuple %s8, %s9, %s10, %s11
  %s13 = sld [smem:[#allocation0]]
  $region78: #{noveld_output_heads.1} parent=0
    _
  %s15 = ssub.s32 1, %s13
  %s16 = scalar_select 0, %s15, %s13
  $region1: #{noveld_output_heads.1} parent=0
    #allocation2 [shape = 'u8[262144]{0}', space=vmem, size = 0x40000, scoped, tag = 'input window, operand 4, single buffered']
    #allocation3 [shape = 's32[1]{0}', space=sflag, size = 0x4, scoped, tag = 'scoped memory for noveld_output_heads.1']
    #allocation4 [shape = 'u8[65536]{0}', space=vmem, size = 0x10000, scoped, tag = 'input window, operand 6, single buffered']
    #allocation5 [shape = 's32[1]{0}', space=sflag, size = 0x4, scoped, tag = 'scoped memory for noveld_output_heads.1']
    #allocation6 [shape = 'u8[512]{0}', space=vmem, size = 0x400, scoped, tag = 'input window, operand 7, single buffered']
    %17 = vsyncpa [#allocation3], 0
    %18 = vsyncpa [#allocation5], 0
    // Predicated region
    $region2: #{noveld_output_heads.1} parent=1 // pred_check
      _
    $region3: #{noveld_output_heads.1} parent=1 // pred_check_branch
      %20 = sbr.rel (0) target = $region5
    $region4: #{noveld_output_heads.1} parent=1 // pred_region
      _
    $region5: #{noveld_output_heads.1} parent=1 // pred_fallthru
      _
    // Predicated region
    $region6: #{noveld_output_heads.1} parent=1 // pred_check
      _
    $region7: #{noveld_output_heads.1} parent=1 // pred_check_branch
      %22 = sbr.rel (0) target = $region9
    $region8: #{noveld_output_heads.1} parent=1 // pred_region
      _
    $region9: #{noveld_output_heads.1} parent=1 // pred_fallthru
      _
    // Predicated region
    $region10: #{noveld_output_heads.1} parent=1 // pred_check
      _
    $region11: #{noveld_output_heads.1} parent=1 // pred_check_branch
      %24 = sbr.rel (0) target = $region13
    $region12: #{noveld_output_heads.1} parent=1 // pred_region
      _
    $region13: #{noveld_output_heads.1} parent=1 // pred_fallthru
      _
    // Predicated region
    $region14: #{noveld_output_heads.1} parent=1 // pred_check
      _
    $region15: #{noveld_output_heads.1} parent=1 // pred_check_branch
      %26 = sbr.rel (0) target = $region17
    $region16: #{noveld_output_heads.1} parent=1 // pred_region
      _
    $region17: #{noveld_output_heads.1} parent=1 // pred_fallthru
      _
    // Predicated region
    $region18: #{noveld_output_heads.1} parent=1 // pred_check
      _
    $region19: #{noveld_output_heads.1} parent=1 // pred_check_branch
      %28 = sbr.rel (0) target = $region21
    $region20: #{noveld_output_heads.1} parent=1 // pred_region
      %s30 = ssub.s32 8192, 8192
      %31 = vsyncadd [#allocation3], %s30
      %s32 = sshll.u32 [#allocation2], 4
      %s33 = int_to_ptr.vmem [resolvable:$true] %s32
      %38 = dma.hbm_to_vmem [thread:$0]  %s4, 8192, %s33, [#allocation3], 256, 256, 16
    $region21: #{noveld_output_heads.1} parent=1 // pred_fallthru
      _
    // Predicated region
    $region22: #{noveld_output_heads.1} parent=1 // pred_check
      _
    $region23: #{noveld_output_heads.1} parent=1 // pred_check_branch
      %40 = sbr.rel (0) target = $region25
    $region24: #{noveld_output_heads.1} parent=1 // pred_region
      _
    $region25: #{noveld_output_heads.1} parent=1 // pred_fallthru
      _
    // Predicated region
    $region26: #{noveld_output_heads.1} parent=1 // pred_check
      _
    $region27: #{noveld_output_heads.1} parent=1 // pred_check_branch
      %42 = sbr.rel (0) target = $region29
    $region28: #{noveld_output_heads.1} parent=1 // pred_region
      %s44 = ssub.s32 2048, 2048
      %45 = vsyncadd [#allocation5], %s44
      %s46 = sshll.u32 [#allocation4], 4
      %s47 = int_to_ptr.vmem [resolvable:$true] %s46
      %52 = dma.hbm_to_vmem [thread:$0]  %s6, 2048, %s47, [#allocation5], 128, 128, 8
    $region29: #{noveld_output_heads.1} parent=1 // pred_fallthru
      _
    // Predicated region
    $region30: #{noveld_output_heads.1} parent=1 // pred_check
      _
    $region31: #{noveld_output_heads.1} parent=1 // pred_check_branch
      %54 = sbr.rel (0) target = $region33
    $region32: #{noveld_output_heads.1} parent=1 // pred_region
      %s56 = ssub.s32 16, 16
      %57 = vsyncadd [#allocation5], %s56
      %s59 = sshll.u32 [#allocation6], 4
      %s60 = int_to_ptr.vmem [resolvable:$true] %s59
      %62 = dma.hbm_to_vmem [thread:$0]  %s7, 16, %s60, [#allocation5]
    $region33: #{noveld_output_heads.1} parent=1 // pred_fallthru
      _
    // Predicated region
    $region34: #{noveld_output_heads.1} parent=1 // pred_check
      _
    $region35: #{noveld_output_heads.1} parent=1 // pred_check_branch
      %64 = sbr.rel (0) target = $region37
    $region36: #{noveld_output_heads.1} parent=1 // pred_region
      %65 = dma.done [#allocation3], 8192
    $region37: #{noveld_output_heads.1} parent=1 // pred_fallthru
      _
    // Predicated region
    $region38: #{noveld_output_heads.1} parent=1 // pred_check
      _
    $region39: #{noveld_output_heads.1} parent=1 // pred_check_branch
      %67 = sbr.rel (0) target = $region41
    $region40: #{noveld_output_heads.1} parent=1 // pred_region
      %68 = dma.done [#allocation5], 2048
    $region41: #{noveld_output_heads.1} parent=1 // pred_fallthru
      _
    // Predicated region
    $region42: #{noveld_output_heads.1} parent=1 // pred_check
      _
    $region43: #{noveld_output_heads.1} parent=1 // pred_check_branch
      %70 = sbr.rel (0) target = $region45
    $region44: #{noveld_output_heads.1} parent=1 // pred_region
      %71 = dma.done [#allocation5], 16
    $region45: #{noveld_output_heads.1} parent=1 // pred_fallthru
      _
    %v72 = vld [vmem:[%s0] sm:$0xff]
    %v73 = vld [vmem:[%s0 + $0x8] sm:$0xff]
    %v74 = vld [vmem:[%s2] sm:$0xff]
    %v75 = vld [vmem:[%s2 + $0x8] sm:$0xff]
    %v76 = vld [vmem:[%s2 + $0x10] sm:$0xff]
    %v77 = vld [vmem:[%s2 + $0x18] sm:$0xff]
    %v78 = vld [vmem:[%s2 + $0x20] sm:$0xff]
    %v79 = vld [vmem:[%s2 + $0x28] sm:$0xff]
    %v80 = vld [vmem:[%s2 + $0x30] sm:$0xff]
    %v81 = vld [vmem:[%s2 + $0x38] sm:$0xff]
    %v82 = vld [vmem:[%s3] sm:$0x3]
    %v84 = vlaneseq
    %v85 = vshrl.u32 %v84, 7
    %v86 = vsub.s32 0, %v85
    %v87 = vrot.slane %v82, %v86
    %v88 = vlaneseq
    %v89 = vshrl.u32 %v88, 7
    %v90 = vsub.s32 1, %v89
    %v91 = vrot.slane %v82, %v90
    %vm94 = vcmask 261120
    %v96 = vsel %vm94, %v72, 0
    %v99 = vsel %vm94, %v73, 0
    %101 = vmatprep.subr.mxu0 %v75
    %102 = vmatpush1.msra.mxu0 %v74
    %103 = vmatprep.subr.mxu0 %v77
    %104 = vmatpush1.msra.mxu0 %v76
    %105 = vmatprep.subr.mxu0 %v79
    %106 = vmatpush1.msra.mxu0 %v78
    %107 = vmatprep.subr.mxu0 %v81
    %108 = vmatpush1.msra.mxu0 %v80
    %109 = vmatprep.subr.mxu0 0.0
    %110 = vmatpush1.msra.mxu0 0.0
    %111 = vmatprep.subr.mxu0 0.0
    %112 = vmatpush1.msra.mxu0 0.0
    %113 = vmatprep.subr.mxu0 0.0
    %114 = vmatpush1.msra.mxu0 0.0
    %115 = vmatprep.subr.mxu0 0.0
    %116 = vmatpush1.msra.mxu0 0.0
    %117 = vmatprep.subr.mxu0 0.0
    %118 = vmatpush1.msra.mxu0 0.0
    %119 = vmatprep.subr.mxu0 0.0
    %120 = vmatpush1.msra.mxu0 0.0
    %121 = vmatprep.subr.mxu0 0.0
    %122 = vmatpush1.msra.mxu0 0.0
    %123 = vmatprep.subr.mxu0 0.0
    %124 = vmatpush1.msra.mxu0 0.0
    %125 = vmatprep.subr.mxu0 0.0
    %126 = vmatpush1.msra.mxu0 0.0
    %127 = vmatprep.subr.mxu0 0.0
    %128 = vmatpush1.msra.mxu0 0.0
    %129 = vmatprep.subr.mxu0 0.0
    %130 = vmatpush1.msra.mxu0 0.0
    %131 = vmatprep.subr.mxu0 0.0
    %132 = vmatpush1.msra.mxu0 0.0
    %133 = vmatprep.subr.mxu0 0.0
    %134 = vmatpush1.msra.mxu0 0.0
    %135 = vmatprep.subr.mxu0 0.0
    %136 = vmatpush1.msra.mxu0 0.0
    %137 = vmatprep.subr.mxu0 0.0
    %138 = vmatpush1.msra.mxu0 0.0
    %139 = vmatprep.subr.mxu0 0.0
    %140 = vmatpush1.msra.mxu0 0.0
    %141 = vmatprep.subr.mxu0 0.0
    %142 = vmatpush1.msra.mxu0 0.0
    %143 = vmatprep.subr.mxu0 0.0
    %144 = vmatpush1.msra.mxu0 0.0
    %145 = vmatprep.subr.mxu0 0.0
    %146 = vmatpush1.msra.mxu0 0.0
    %147 = vmatprep.subr.mxu0 0.0
    %148 = vmatpush1.msra.mxu0 0.0
    %149 = vmatprep.subr.mxu0 0.0
    %150 = vmatpush1.msra.mxu0 0.0
    %151 = vmatprep.subr.mxu0 0.0
    %152 = vmatpush1.msra.mxu0 0.0
    %153 = vmatprep.subr.mxu0 0.0
    %154 = vmatpush1.msra.mxu0 0.0
    %155 = vmatprep.subr.mxu0 0.0
    %156 = vmatpush1.msra.mxu0 0.0
    %157 = vmatprep.subr.mxu0 0.0
    %158 = vmatpush1.msra.mxu0 0.0
    %159 = vmatprep.subr.mxu0 0.0
    %160 = vmatpush1.msra.mxu0 0.0
    %161 = vmatprep.subr.mxu0 0.0
    %162 = vmatpush1.msra.mxu0 0.0
    %163 = vmatprep.subr.mxu0 0.0
    %164 = vmatpush1.msra.mxu0 0.0
    %165 = vmatprep.mubr.f32.mxu0 0.0
    %166 = vmatmul.mubr.f32.gmra.mrb[0].mxu0 %v96
    %v167 = vpop.f32.mrb[0].mxu0
    %v168 = vadd.f32 %v87, %v167
    %v169 = vpop.f32.mrb[0].mxu0
    %v170 = vadd.f32 %v91, %v169
    %171 = vmatprep.mubr.f32.mxu0 0.0
    %172 = vmatmul.mubr.f32.gmra.mrb[0].mxu0 %v99
    %v173 = vpop.f32.mrb[0].mxu0
    %v174 = vadd.f32 %v87, %v173
    %v175 = vpop.f32.mrb[0].mxu0
    %v176 = vadd.f32 %v91, %v175
    %177 = vdwg.mxu0
    %v178 = vmax.f32 %v168, 0.0
    %v179 = vmax.f32 %v170, 0.0
    %v180 = vmax.f32 %v174, 0.0
    %v181 = vmax.f32 %v176, 0.0
    %v182 = vld [vmem:[#allocation2] sm:$0xff]
    %v183 = vld [vmem:[#allocation2 + $0x8] sm:$0xff]
    %v184 = vld [vmem:[#allocation2 + $0x10] sm:$0xff]
    %v185 = vld [vmem:[#allocation2 + $0x18] sm:$0xff]
    %v186 = vld [vmem:[#allocation2 + $0x20] sm:$0xff]
    %v187 = vld [vmem:[#allocation2 + $0x28] sm:$0xff]
    %v188 = vld [vmem:[#allocation2 + $0x30] sm:$0xff]
    %v189 = vld [vmem:[#allocation2 + $0x38] sm:$0xff]
    %v190 = vld [vmem:[#allocation2 + $0x40] sm:$0xff]
    %v191 = vld [vmem:[#allocation2 + $0x48] sm:$0xff]
    %v192 = vld [vmem:[#allocation2 + $0x50] sm:$0xff]
    %v193 = vld [vmem:[#allocation2 + $0x58] sm:$0xff]
    %v194 = vld [vmem:[#allocation2 + $0x60] sm:$0xff]
    %v195 = vld [vmem:[#allocation2 + $0x68] sm:$0xff]
    %v196 = vld [vmem:[#allocation2 + $0x70] sm:$0xff]
    %v197 = vld [vmem:[#allocation2 + $0x78] sm:$0xff]
    %v198 = vld [vmem:[#allocation2 + $0x80] sm:$0xff]
    %v199 = vld [vmem:[#allocation2 + $0x88] sm:$0xff]
    %v200 = vld [vmem:[#allocation2 + $0x90] sm:$0xff]
    %v201 = vld [vmem:[#allocation2 + $0x98] sm:$0xff]
    %v202 = vld [vmem:[#allocation2 + $0xa0] sm:$0xff]
    %v203 = vld [vmem:[#allocation2 + $0xa8] sm:$0xff]
    %v204 = vld [vmem:[#allocation2 + $0xb0] sm:$0xff]
    %v205 = vld [vmem:[#allocation2 + $0xb8] sm:$0xff]
    %v206 = vld [vmem:[#allocation2 + $0xc0] sm:$0xff]
    %v207 = vld [vmem:[#allocation2 + $0xc8] sm:$0xff]
    %v208 = vld [vmem:[#allocation2 + $0xd0] sm:$0xff]
    %v209 = vld [vmem:[#allocation2 + $0xd8] sm:$0xff]
    %v210 = vld [vmem:[#allocation2 + $0xe0] sm:$0xff]
    %v211 = vld [vmem:[#allocation2 + $0xe8] sm:$0xff]
    %v212 = vld [vmem:[#allocation2 + $0xf0] sm:$0xff]
    %v213 = vld [vmem:[#allocation2 + $0xf8] sm:$0xff]
    %v214 = vld [vmem:[#allocation2 + $0x100] sm:$0xff]
    %v215 = vld [vmem:[#allocation2 + $0x108] sm:$0xff]
    %v216 = vld [vmem:[#allocation2 + $0x110] sm:$0xff]
    %v217 = vld [vmem:[#allocation2 + $0x118] sm:$0xff]
    %v218 = vld [vmem:[#allocation2 + $0x120] sm:$0xff]
    %v219 = vld [vmem:[#allocation2 + $0x128] sm:$0xff]
    %v220 = vld [vmem:[#allocation2 + $0x130] sm:$0xff]
    %v221 = vld [vmem:[#allocation2 + $0x138] sm:$0xff]
    %v222 = vld [vmem:[#allocation2 + $0x140] sm:$0xff]
    %v223 = vld [vmem:[#allocation2 + $0x148] sm:$0xff]
    %v224 = vld [vmem:[#allocation2 + $0x150] sm:$0xff]
    %v225 = vld [vmem:[#allocation2 + $0x158] sm:$0xff]
    %v226 = vld [vmem:[#allocation2 + $0x160] sm:$0xff]
    %v227 = vld [vmem:[#allocation2 + $0x168] sm:$0xff]
    %v228 = vld [vmem:[#allocation2 + $0x170] sm:$0xff]
    %v229 = vld [vmem:[#allocation2 + $0x178] sm:$0xff]
    %v230 = vld [vmem:[#allocation2 + $0x180] sm:$0xff]
    %v231 = vld [vmem:[#allocation2 + $0x188] sm:$0xff]
    %v232 = vld [vmem:[#allocation2 + $0x190] sm:$0xff]
    %v233 = vld [vmem:[#allocation2 + $0x198] sm:$0xff]
    %v234 = vld [vmem:[#allocation2 + $0x1a0] sm:$0xff]
    %v235 = vld [vmem:[#allocation2 + $0x1a8] sm:$0xff]
    %v236 = vld [vmem:[#allocation2 + $0x1b0] sm:$0xff]
    %v237 = vld [vmem:[#allocation2 + $0x1b8] sm:$0xff]
    %v238 = vld [vmem:[#allocation2 + $0x1c0] sm:$0xff]
    %v239 = vld [vmem:[#allocation2 + $0x1c8] sm:$0xff]
    %v240 = vld [vmem:[#allocation2 + $0x1d0] sm:$0xff]
    %v241 = vld [vmem:[#allocation2 + $0x1d8] sm:$0xff]
    %v242 = vld [vmem:[#allocation2 + $0x1e0] sm:$0xff]
    %v243 = vld [vmem:[#allocation2 + $0x1e8] sm:$0xff]
    %v244 = vld [vmem:[#allocation2 + $0x1f0] sm:$0xff]
    %v245 = vld [vmem:[#allocation2 + $0x1f8] sm:$0xff]
    %v246 = vld [vmem:[%s5] sm:$0x3]
    %v248 = vlaneseq
    %v249 = vshrl.u32 %v248, 7
    %v250 = vsub.s32 0, %v249
    %v251 = vrot.slane %v246, %v250
    %v252 = vlaneseq
    %v253 = vshrl.u32 %v252, 7
    %v254 = vsub.s32 1, %v253
    %v255 = vrot.slane %v246, %v254
    %258 = vmatprep.subr.mxu0 %v183
    %259 = vmatpush1.msra.mxu0 %v182
    %260 = vmatprep.subr.mxu0 %v185
    %261 = vmatpush1.msra.mxu0 %v184
    %262 = vmatprep.subr.mxu0 %v187
    %263 = vmatpush1.msra.mxu0 %v186
    %264 = vmatprep.subr.mxu0 %v189
    %265 = vmatpush1.msra.mxu0 %v188
    %266 = vmatprep.subr.mxu0 %v191
    %267 = vmatpush1.msra.mxu0 %v190
    %268 = vmatprep.subr.mxu0 %v193
    %269 = vmatpush1.msra.mxu0 %v192
    %270 = vmatprep.subr.mxu0 %v195
    %271 = vmatpush1.msra.mxu0 %v194
    %272 = vmatprep.subr.mxu0 %v197
    %273 = vmatpush1.msra.mxu0 %v196
    %274 = vmatprep.subr.mxu0 %v199
    %275 = vmatpush1.msra.mxu0 %v198
    %276 = vmatprep.subr.mxu0 %v201
    %277 = vmatpush1.msra.mxu0 %v200
    %278 = vmatprep.subr.mxu0 %v203
    %279 = vmatpush1.msra.mxu0 %v202
    %280 = vmatprep.subr.mxu0 %v205
    %281 = vmatpush1.msra.mxu0 %v204
    %282 = vmatprep.subr.mxu0 %v207
    %283 = vmatpush1.msra.mxu0 %v206
    %284 = vmatprep.subr.mxu0 %v209
    %285 = vmatpush1.msra.mxu0 %v208
    %286 = vmatprep.subr.mxu0 %v211
    %287 = vmatpush1.msra.mxu0 %v210
    %288 = vmatprep.subr.mxu0 %v213
    %289 = vmatpush1.msra.mxu0 %v212
    %290 = vmatprep.subr.mxu0 %v215
    %291 = vmatpush1.msra.mxu0 %v214
    %292 = vmatprep.subr.mxu0 %v217
    %293 = vmatpush1.msra.mxu0 %v216
    %294 = vmatprep.subr.mxu0 %v219
    %295 = vmatpush1.msra.mxu0 %v218
    %296 = vmatprep.subr.mxu0 %v221
    %297 = vmatpush1.msra.mxu0 %v220
    %298 = vmatprep.subr.mxu0 %v223
    %299 = vmatpush1.msra.mxu0 %v222
    %300 = vmatprep.subr.mxu0 %v225
    %301 = vmatpush1.msra.mxu0 %v224
    %302 = vmatprep.subr.mxu0 %v227
    %303 = vmatpush1.msra.mxu0 %v226
    %304 = vmatprep.subr.mxu0 %v229
    %305 = vmatpush1.msra.mxu0 %v228
    %306 = vmatprep.subr.mxu0 %v231
    %307 = vmatpush1.msra.mxu0 %v230
    %308 = vmatprep.subr.mxu0 %v233
    %309 = vmatpush1.msra.mxu0 %v232
    %310 = vmatprep.subr.mxu0 %v235
    %311 = vmatpush1.msra.mxu0 %v234
    %312 = vmatprep.subr.mxu0 %v237
    %313 = vmatpush1.msra.mxu0 %v236
    %314 = vmatprep.subr.mxu0 %v239
    %315 = vmatpush1.msra.mxu0 %v238
    %316 = vmatprep.subr.mxu0 %v241
    %317 = vmatpush1.msra.mxu0 %v240
    %318 = vmatprep.subr.mxu0 %v243
    %319 = vmatpush1.msra.mxu0 %v242
    %320 = vmatprep.subr.mxu0 %v245
    %321 = vmatpush1.msra.mxu0 %v244
    %322 = vmatprep.mubr.f32.mxu0 %v179
    %323 = vmatmul.mubr.f32.gmra.mrb[0].mxu0 %v178
    %v324 = vpop.f32.mrb[0].mxu0
    %v325 = vadd.f32 %v251, %v324
    %v326 = vpop.f32.mrb[0].mxu0
    %v327 = vadd.f32 %v255, %v326
    %328 = vmatprep.mubr.f32.mxu0 %v181
    %329 = vmatmul.mubr.f32.gmra.mrb[0].mxu0 %v180
    %v330 = vpop.f32.mrb[0].mxu0
    %v331 = vadd.f32 %v251, %v330
    %v332 = vpop.f32.mrb[0].mxu0
    %v333 = vadd.f32 %v255, %v332
    %334 = vdwg.mxu0
    %v335 = vmax.f32 %v325, 0.0
    %v336 = vmax.f32 %v331, 0.0
    %v337 = vld [vmem:[#allocation4] sm:$0xff]
    %v338 = vld [vmem:[#allocation4 + $0x8] sm:$0xff]
    %v339 = vld [vmem:[#allocation4 + $0x10] sm:$0xff]
    %v340 = vld [vmem:[#allocation4 + $0x18] sm:$0xff]
    %v341 = vld [vmem:[#allocation4 + $0x20] sm:$0xff]
    %v342 = vld [vmem:[#allocation4 + $0x28] sm:$0xff]
    %v343 = vld [vmem:[#allocation4 + $0x30] sm:$0xff]
    %v344 = vld [vmem:[#allocation4 + $0x38] sm:$0xff]
    %v345 = vld [vmem:[#allocation4 + $0x40] sm:$0xff]
    %v346 = vld [vmem:[#allocation4 + $0x48] sm:$0xff]
    %v347 = vld [vmem:[#allocation4 + $0x50] sm:$0xff]
    %v348 = vld [vmem:[#allocation4 + $0x58] sm:$0xff]
    %v349 = vld [vmem:[#allocation4 + $0x60] sm:$0xff]
    %v350 = vld [vmem:[#allocation4 + $0x68] sm:$0xff]
    %v351 = vld [vmem:[#allocation4 + $0x70] sm:$0xff]
    %v352 = vld [vmem:[#allocation4 + $0x78] sm:$0xff]
    %v353 = vld [vmem:[#allocation6] sm:$0x1]
    %v355 = vlaneseq
    %v356 = vshrl.u32 %v355, 7
    %v357 = vsub.s32 0, %v356
    %v358 = vrot.slane %v353, %v357
    %360 = vmatprep.subr.mxu0 0.0
    %361 = vmatpush1.msra.mxu0 %v337
    %362 = vmatprep.subr.mxu0 0.0
    %363 = vmatpush1.msra.mxu0 %v338
    %364 = vmatprep.subr.mxu0 0.0
    %365 = vmatpush1.msra.mxu0 %v339
    %366 = vmatprep.subr.mxu0 0.0
    %367 = vmatpush1.msra.mxu0 %v340
    %368 = vmatprep.subr.mxu0 0.0
    %369 = vmatpush1.msra.mxu0 %v341
    %370 = vmatprep.subr.mxu0 0.0
    %371 = vmatpush1.msra.mxu0 %v342
    %372 = vmatprep.subr.mxu0 0.0
    %373 = vmatpush1.msra.mxu0 %v343
    %374 = vmatprep.subr.mxu0 0.0
    %375 = vmatpush1.msra.mxu0 %v344
    %376 = vmatprep.subr.mxu0 0.0
    %377 = vmatpush1.msra.mxu0 %v345
    %378 = vmatprep.subr.mxu0 0.0
    %379 = vmatpush1.msra.mxu0 %v346
    %380 = vmatprep.subr.mxu0 0.0
    %381 = vmatpush1.msra.mxu0 %v347
    %382 = vmatprep.subr.mxu0 0.0
    %383 = vmatpush1.msra.mxu0 %v348
    %384 = vmatprep.subr.mxu0 0.0
    %385 = vmatpush1.msra.mxu0 %v349
    %386 = vmatprep.subr.mxu0 0.0
    %387 = vmatpush1.msra.mxu0 %v350
    %388 = vmatprep.subr.mxu0 0.0
    %389 = vmatpush1.msra.mxu0 %v351
    %390 = vmatprep.subr.mxu0 0.0
    %391 = vmatpush1.msra.mxu0 %v352
    %392 = vmatprep.subr.mxu0 0.0
    %393 = vmatpush1.msra.mxu0 0.0
    %394 = vmatprep.subr.mxu0 0.0
    %395 = vmatpush1.msra.mxu0 0.0
    %396 = vmatprep.subr.mxu0 0.0
    %397 = vmatpush1.msra.mxu0 0.0
    %398 = vmatprep.subr.mxu0 0.0
    %399 = vmatpush1.msra.mxu0 0.0
    %400 = vmatprep.subr.mxu0 0.0
    %401 = vmatpush1.msra.mxu0 0.0
    %402 = vmatprep.subr.mxu0 0.0
    %403 = vmatpush1.msra.mxu0 0.0
    %404 = vmatprep.subr.mxu0 0.0
    %405 = vmatpush1.msra.mxu0 0.0
    %406 = vmatprep.subr.mxu0 0.0
    %407 = vmatpush1.msra.mxu0 0.0
    %408 = vmatprep.subr.mxu0 0.0
    %409 = vmatpush1.msra.mxu0 0.0
    %410 = vmatprep.subr.mxu0 0.0
    %411 = vmatpush1.msra.mxu0 0.0
    %412 = vmatprep.subr.mxu0 0.0
    %413 = vmatpush1.msra.mxu0 0.0
    %414 = vmatprep.subr.mxu0 0.0
    %415 = vmatpush1.msra.mxu0 0.0
    %416 = vmatprep.subr.mxu0 0.0
    %417 = vmatpush1.msra.mxu0 0.0
    %418 = vmatprep.subr.mxu0 0.0
    %419 = vmatpush1.msra.mxu0 0.0
    %420 = vmatprep.subr.mxu0 0.0
    %421 = vmatpush1.msra.mxu0 0.0
    %422 = vmatprep.subr.mxu0 0.0
    %423 = vmatpush1.msra.mxu0 0.0
    %424 = vmatprep.mubr.f32.mxu0 0.0
    %425 = vmatmul.mubr.f32.gmra.mrb[0].mxu0 %v335
    %v426 = vpop.f32.mrb[0].mxu0
    %v427 = vadd.f32 %v358, %v426
    %v428 = vpop.f32.mrb[0].mxu0
    %429 = vmatprep.mubr.f32.mxu0 0.0
    %430 = vmatmul.mubr.f32.gmra.mrb[0].mxu0 %v336
    %v431 = vpop.f32.mrb[0].mxu0
    %v432 = vadd.f32 %v358, %v431
    %v433 = vpop.f32.mrb[0].mxu0
    %434 = vdwg.mxu0
    %435 = vst [vmem:[%s8] sm:$0xff] %v427
    %436 = vst [vmem:[%s8 + $0x8] sm:$0xff] %v432
    %437 = vst [vmem:[%s9] sm:$0xff] %v327
    %438 = vst [vmem:[%s9 + $0x8] sm:$0xff] %v333
    %v439 = vld [vmem:[%s1] sm:$0xff]
    %v440 = vld [vmem:[%s1 + $0x8] sm:$0xff]
    %v441 = vld [vmem:[%s2] sm:$0xff]
    %v442 = vld [vmem:[%s2 + $0x8] sm:$0xff]
    %v443 = vld [vmem:[%s2 + $0x10] sm:$0xff]
    %v444 = vld [vmem:[%s2 + $0x18] sm:$0xff]
    %v445 = vld [vmem:[%s2 + $0x20] sm:$0xff]
    %v446 = vld [vmem:[%s2 + $0x28] sm:$0xff]
    %v447 = vld [vmem:[%s2 + $0x30] sm:$0xff]
    %v448 = vld [vmem:[%s2 + $0x38] sm:$0xff]
    %v449 = vld [vmem:[%s3] sm:$0x3]
    %v451 = vlaneseq
    %v452 = vshrl.u32 %v451, 7
    %v453 = vsub.s32 0, %v452
    %v454 = vrot.slane %v449, %v453
    %v455 = vlaneseq
    %v456 = vshrl.u32 %v455, 7
    %v457 = vsub.s32 1, %v456
    %v458 = vrot.slane %v449, %v457
    %v462 = vsel %vm94, %v439, 0
    %v465 = vsel %vm94, %v440, 0
    %467 = vmatprep.subr.mxu0 %v442
    %468 = vmatpush1.msra.mxu0 %v441
    %469 = vmatprep.subr.mxu0 %v444
    %470 = vmatpush1.msra.mxu0 %v443
    %471 = vmatprep.subr.mxu0 %v446
    %472 = vmatpush1.msra.mxu0 %v445
    %473 = vmatprep.subr.mxu0 %v448
    %474 = vmatpush1.msra.mxu0 %v447
    %475 = vmatprep.subr.mxu0 0.0
    %476 = vmatpush1.msra.mxu0 0.0
    %477 = vmatprep.subr.mxu0 0.0
    %478 = vmatpush1.msra.mxu0 0.0
    %479 = vmatprep.subr.mxu0 0.0
    %480 = vmatpush1.msra.mxu0 0.0
    %481 = vmatprep.subr.mxu0 0.0
    %482 = vmatpush1.msra.mxu0 0.0
    %483 = vmatprep.subr.mxu0 0.0
    %484 = vmatpush1.msra.mxu0 0.0
    %485 = vmatprep.subr.mxu0 0.0
    %486 = vmatpush1.msra.mxu0 0.0
    %487 = vmatprep.subr.mxu0 0.0
    %488 = vmatpush1.msra.mxu0 0.0
    %489 = vmatprep.subr.mxu0 0.0
    %490 = vmatpush1.msra.mxu0 0.0
    %491 = vmatprep.subr.mxu0 0.0
    %492 = vmatpush1.msra.mxu0 0.0
    %493 = vmatprep.subr.mxu0 0.0
    %494 = vmatpush1.msra.mxu0 0.0
    %495 = vmatprep.subr.mxu0 0.0
    %496 = vmatpush1.msra.mxu0 0.0
    %497 = vmatprep.subr.mxu0 0.0
    %498 = vmatpush1.msra.mxu0 0.0
    %499 = vmatprep.subr.mxu0 0.0
    %500 = vmatpush1.msra.mxu0 0.0
    %501 = vmatprep.subr.mxu0 0.0
    %502 = vmatpush1.msra.mxu0 0.0
    %503 = vmatprep.subr.mxu0 0.0
    %504 = vmatpush1.msra.mxu0 0.0
    %505 = vmatprep.subr.mxu0 0.0
    %506 = vmatpush1.msra.mxu0 0.0
    %507 = vmatprep.subr.mxu0 0.0
    %508 = vmatpush1.msra.mxu0 0.0
    %509 = vmatprep.subr.mxu0 0.0
    %510 = vmatpush1.msra.mxu0 0.0
    %511 = vmatprep.subr.mxu0 0.0
    %512 = vmatpush1.msra.mxu0 0.0
    %513 = vmatprep.subr.mxu0 0.0
    %514 = vmatpush1.msra.mxu0 0.0
    %515 = vmatprep.subr.mxu0 0.0
    %516 = vmatpush1.msra.mxu0 0.0
    %517 = vmatprep.subr.mxu0 0.0
    %518 = vmatpush1.msra.mxu0 0.0
    %519 = vmatprep.subr.mxu0 0.0
    %520 = vmatpush1.msra.mxu0 0.0
    %521 = vmatprep.subr.mxu0 0.0
    %522 = vmatpush1.msra.mxu0 0.0
    %523 = vmatprep.subr.mxu0 0.0
    %524 = vmatpush1.msra.mxu0 0.0
    %525 = vmatprep.subr.mxu0 0.0
    %526 = vmatpush1.msra.mxu0 0.0
    %527 = vmatprep.subr.mxu0 0.0
    %528 = vmatpush1.msra.mxu0 0.0
    %529 = vmatprep.subr.mxu0 0.0
    %530 = vmatpush1.msra.mxu0 0.0
    %531 = vmatprep.mubr.f32.mxu0 0.0
    %532 = vmatmul.mubr.f32.gmra.mrb[0].mxu0 %v462
    %v533 = vpop.f32.mrb[0].mxu0
    %v534 = vadd.f32 %v454, %v533
    %v535 = vpop.f32.mrb[0].mxu0
    %v536 = vadd.f32 %v458, %v535
    %537 = vmatprep.mubr.f32.mxu0 0.0
    %538 = vmatmul.mubr.f32.gmra.mrb[0].mxu0 %v465
    %v539 = vpop.f32.mrb[0].mxu0
    %v540 = vadd.f32 %v454, %v539
    %v541 = vpop.f32.mrb[0].mxu0
    %v542 = vadd.f32 %v458, %v541
    %543 = vdwg.mxu0
    %v544 = vmax.f32 %v534, 0.0
    %v545 = vmax.f32 %v536, 0.0
    %v546 = vmax.f32 %v540, 0.0
    %v547 = vmax.f32 %v542, 0.0
    %v548 = vld [vmem:[#allocation2] sm:$0xff]
    %v549 = vld [vmem:[#allocation2 + $0x8] sm:$0xff]
    %v550 = vld [vmem:[#allocation2 + $0x10] sm:$0xff]
    %v551 = vld [vmem:[#allocation2 + $0x18] sm:$0xff]
    %v552 = vld [vmem:[#allocation2 + $0x20] sm:$0xff]
    %v553 = vld [vmem:[#allocation2 + $0x28] sm:$0xff]
    %v554 = vld [vmem:[#allocation2 + $0x30] sm:$0xff]
    %v555 = vld [vmem:[#allocation2 + $0x38] sm:$0xff]
    %v556 = vld [vmem:[#allocation2 + $0x40] sm:$0xff]
    %v557 = vld [vmem:[#allocation2 + $0x48] sm:$0xff]
    %v558 = vld [vmem:[#allocation2 + $0x50] sm:$0xff]
    %v559 = vld [vmem:[#allocation2 + $0x58] sm:$0xff]
    %v560 = vld [vmem:[#allocation2 + $0x60] sm:$0xff]
    %v561 = vld [vmem:[#allocation2 + $0x68] sm:$0xff]
    %v562 = vld [vmem:[#allocation2 + $0x70] sm:$0xff]
    %v563 = vld [vmem:[#allocation2 + $0x78] sm:$0xff]
    %v564 = vld [vmem:[#allocation2 + $0x80] sm:$0xff]
    %v565 = vld [vmem:[#allocation2 + $0x88] sm:$0xff]
    %v566 = vld [vmem:[#allocation2 + $0x90] sm:$0xff]
    %v567 = vld [vmem:[#allocation2 + $0x98] sm:$0xff]
    %v568 = vld [vmem:[#allocation2 + $0xa0] sm:$0xff]
    %v569 = vld [vmem:[#allocation2 + $0xa8] sm:$0xff]
    %v570 = vld [vmem:[#allocation2 + $0xb0] sm:$0xff]
    %v571 = vld [vmem:[#allocation2 + $0xb8] sm:$0xff]
    %v572 = vld [vmem:[#allocation2 + $0xc0] sm:$0xff]
    %v573 = vld [vmem:[#allocation2 + $0xc8] sm:$0xff]
    %v574 = vld [vmem:[#allocation2 + $0xd0] sm:$0xff]
    %v575 = vld [vmem:[#allocation2 + $0xd8] sm:$0xff]
    %v576 = vld [vmem:[#allocation2 + $0xe0] sm:$0xff]
    %v577 = vld [vmem:[#allocation2 + $0xe8] sm:$0xff]
    %v578 = vld [vmem:[#allocation2 + $0xf0] sm:$0xff]
    %v579 = vld [vmem:[#allocation2 + $0xf8] sm:$0xff]
    %v580 = vld [vmem:[#allocation2 + $0x100] sm:$0xff]
    %v581 = vld [vmem:[#allocation2 + $0x108] sm:$0xff]
    %v582 = vld [vmem:[#allocation2 + $0x110] sm:$0xff]
    %v583 = vld [vmem:[#allocation2 + $0x118] sm:$0xff]
    %v584 = vld [vmem:[#allocation2 + $0x120] sm:$0xff]
    %v585 = vld [vmem:[#allocation2 + $0x128] sm:$0xff]
    %v586 = vld [vmem:[#allocation2 + $0x130] sm:$0xff]
    %v587 = vld [vmem:[#allocation2 + $0x138] sm:$0xff]
    %v588 = vld [vmem:[#allocation2 + $0x140] sm:$0xff]
    %v589 = vld [vmem:[#allocation2 + $0x148] sm:$0xff]
    %v590 = vld [vmem:[#allocation2 + $0x150] sm:$0xff]
    %v591 = vld [vmem:[#allocation2 + $0x158] sm:$0xff]
    %v592 = vld [vmem:[#allocation2 + $0x160] sm:$0xff]
    %v593 = vld [vmem:[#allocation2 + $0x168] sm:$0xff]
    %v594 = vld [vmem:[#allocation2 + $0x170] sm:$0xff]
    %v595 = vld [vmem:[#allocation2 + $0x178] sm:$0xff]
    %v596 = vld [vmem:[#allocation2 + $0x180] sm:$0xff]
    %v597 = vld [vmem:[#allocation2 + $0x188] sm:$0xff]
    %v598 = vld [vmem:[#allocation2 + $0x190] sm:$0xff]
    %v599 = vld [vmem:[#allocation2 + $0x198] sm:$0xff]
    %v600 = vld [vmem:[#allocation2 + $0x1a0] sm:$0xff]
    %v601 = vld [vmem:[#allocation2 + $0x1a8] sm:$0xff]
    %v602 = vld [vmem:[#allocation2 + $0x1b0] sm:$0xff]
    %v603 = vld [vmem:[#allocation2 + $0x1b8] sm:$0xff]
    %v604 = vld [vmem:[#allocation2 + $0x1c0] sm:$0xff]
    %v605 = vld [vmem:[#allocation2 + $0x1c8] sm:$0xff]
    %v606 = vld [vmem:[#allocation2 + $0x1d0] sm:$0xff]
    %v607 = vld [vmem:[#allocation2 + $0x1d8] sm:$0xff]
    %v608 = vld [vmem:[#allocation2 + $0x1e0] sm:$0xff]
    %v609 = vld [vmem:[#allocation2 + $0x1e8] sm:$0xff]
    %v610 = vld [vmem:[#allocation2 + $0x1f0] sm:$0xff]
    %v611 = vld [vmem:[#allocation2 + $0x1f8] sm:$0xff]
    %v612 = vld [vmem:[%s5] sm:$0x3]
    %v614 = vlaneseq
    %v615 = vshrl.u32 %v614, 7
    %v616 = vsub.s32 0, %v615
    %v617 = vrot.slane %v612, %v616
    %v618 = vlaneseq
    %v619 = vshrl.u32 %v618, 7
    %v620 = vsub.s32 1, %v619
    %v621 = vrot.slane %v612, %v620
    %624 = vmatprep.subr.mxu0 %v549
    %625 = vmatpush1.msra.mxu0 %v548
    %626 = vmatprep.subr.mxu0 %v551
    %627 = vmatpush1.msra.mxu0 %v550
    %628 = vmatprep.subr.mxu0 %v553
    %629 = vmatpush1.msra.mxu0 %v552
    %630 = vmatprep.subr.mxu0 %v555
    %631 = vmatpush1.msra.mxu0 %v554
    %632 = vmatprep.subr.mxu0 %v557
    %633 = vmatpush1.msra.mxu0 %v556
    %634 = vmatprep.subr.mxu0 %v559
    %635 = vmatpush1.msra.mxu0 %v558
    %636 = vmatprep.subr.mxu0 %v561
    %637 = vmatpush1.msra.mxu0 %v560
    %638 = vmatprep.subr.mxu0 %v563
    %639 = vmatpush1.msra.mxu0 %v562
    %640 = vmatprep.subr.mxu0 %v565
    %641 = vmatpush1.msra.mxu0 %v564
    %642 = vmatprep.subr.mxu0 %v567
    %643 = vmatpush1.msra.mxu0 %v566
    %644 = vmatprep.subr.mxu0 %v569
    %645 = vmatpush1.msra.mxu0 %v568
    %646 = vmatprep.subr.mxu0 %v571
    %647 = vmatpush1.msra.mxu0 %v570
    %648 = vmatprep.subr.mxu0 %v573
    %649 = vmatpush1.msra.mxu0 %v572
    %650 = vmatprep.subr.mxu0 %v575
    %651 = vmatpush1.msra.mxu0 %v574
    %652 = vmatprep.subr.mxu0 %v577
    %653 = vmatpush1.msra.mxu0 %v576
    %654 = vmatprep.subr.mxu0 %v579
    %655 = vmatpush1.msra.mxu0 %v578
    %656 = vmatprep.subr.mxu0 %v581
    %657 = vmatpush1.msra.mxu0 %v580
    %658 = vmatprep.subr.mxu0 %v583
    %659 = vmatpush1.msra.mxu0 %v582
    %660 = vmatprep.subr.mxu0 %v585
    %661 = vmatpush1.msra.mxu0 %v584
    %662 = vmatprep.subr.mxu0 %v587
    %663 = vmatpush1.msra.mxu0 %v586
    %664 = vmatprep.subr.mxu0 %v589
    %665 = vmatpush1.msra.mxu0 %v588
    %666 = vmatprep.subr.mxu0 %v591
    %667 = vmatpush1.msra.mxu0 %v590
    %668 = vmatprep.subr.mxu0 %v593
    %669 = vmatpush1.msra.mxu0 %v592
    %670 = vmatprep.subr.mxu0 %v595
    %671 = vmatpush1.msra.mxu0 %v594
    %672 = vmatprep.subr.mxu0 %v597
    %673 = vmatpush1.msra.mxu0 %v596
    %674 = vmatprep.subr.mxu0 %v599
    %675 = vmatpush1.msra.mxu0 %v598
    %676 = vmatprep.subr.mxu0 %v601
    %677 = vmatpush1.msra.mxu0 %v600
    %678 = vmatprep.subr.mxu0 %v603
    %679 = vmatpush1.msra.mxu0 %v602
    %680 = vmatprep.subr.mxu0 %v605
    %681 = vmatpush1.msra.mxu0 %v604
    %682 = vmatprep.subr.mxu0 %v607
    %683 = vmatpush1.msra.mxu0 %v606
    %684 = vmatprep.subr.mxu0 %v609
    %685 = vmatpush1.msra.mxu0 %v608
    %686 = vmatprep.subr.mxu0 %v611
    %687 = vmatpush1.msra.mxu0 %v610
    %688 = vmatprep.mubr.f32.mxu0 %v545
    %689 = vmatmul.mubr.f32.gmra.mrb[0].mxu0 %v544
    %v690 = vpop.f32.mrb[0].mxu0
    %v691 = vadd.f32 %v617, %v690
    %v692 = vpop.f32.mrb[0].mxu0
    %v693 = vadd.f32 %v621, %v692
    %694 = vmatprep.mubr.f32.mxu0 %v547
    %695 = vmatmul.mubr.f32.gmra.mrb[0].mxu0 %v546
    %v696 = vpop.f32.mrb[0].mxu0
    %v697 = vadd.f32 %v617, %v696
    %v698 = vpop.f32.mrb[0].mxu0
    %v699 = vadd.f32 %v621, %v698
    %700 = vdwg.mxu0
    %v701 = vmax.f32 %v691, 0.0
    %v702 = vmax.f32 %v697, 0.0
    %v703 = vld [vmem:[#allocation4] sm:$0xff]
    %v704 = vld [vmem:[#allocation4 + $0x8] sm:$0xff]
    %v705 = vld [vmem:[#allocation4 + $0x10] sm:$0xff]
    %v706 = vld [vmem:[#allocation4 + $0x18] sm:$0xff]
    %v707 = vld [vmem:[#allocation4 + $0x20] sm:$0xff]
    %v708 = vld [vmem:[#allocation4 + $0x28] sm:$0xff]
    %v709 = vld [vmem:[#allocation4 + $0x30] sm:$0xff]
    %v710 = vld [vmem:[#allocation4 + $0x38] sm:$0xff]
    %v711 = vld [vmem:[#allocation4 + $0x40] sm:$0xff]
    %v712 = vld [vmem:[#allocation4 + $0x48] sm:$0xff]
    %v713 = vld [vmem:[#allocation4 + $0x50] sm:$0xff]
    %v714 = vld [vmem:[#allocation4 + $0x58] sm:$0xff]
    %v715 = vld [vmem:[#allocation4 + $0x60] sm:$0xff]
    %v716 = vld [vmem:[#allocation4 + $0x68] sm:$0xff]
    %v717 = vld [vmem:[#allocation4 + $0x70] sm:$0xff]
    %v718 = vld [vmem:[#allocation4 + $0x78] sm:$0xff]
    %v719 = vld [vmem:[#allocation6] sm:$0x1]
    %v721 = vlaneseq
    %v722 = vshrl.u32 %v721, 7
    %v723 = vsub.s32 0, %v722
    %v724 = vrot.slane %v719, %v723
    %726 = vmatprep.subr.mxu0 0.0
    %727 = vmatpush1.msra.mxu0 %v703
    %728 = vmatprep.subr.mxu0 0.0
    %729 = vmatpush1.msra.mxu0 %v704
    %730 = vmatprep.subr.mxu0 0.0
    %731 = vmatpush1.msra.mxu0 %v705
    %732 = vmatprep.subr.mxu0 0.0
    %733 = vmatpush1.msra.mxu0 %v706
    %734 = vmatprep.subr.mxu0 0.0
    %735 = vmatpush1.msra.mxu0 %v707
    %736 = vmatprep.subr.mxu0 0.0
    %737 = vmatpush1.msra.mxu0 %v708
    %738 = vmatprep.subr.mxu0 0.0
    %739 = vmatpush1.msra.mxu0 %v709
    %740 = vmatprep.subr.mxu0 0.0
    %741 = vmatpush1.msra.mxu0 %v710
    %742 = vmatprep.subr.mxu0 0.0
    %743 = vmatpush1.msra.mxu0 %v711
    %744 = vmatprep.subr.mxu0 0.0
    %745 = vmatpush1.msra.mxu0 %v712
    %746 = vmatprep.subr.mxu0 0.0
    %747 = vmatpush1.msra.mxu0 %v713
    %748 = vmatprep.subr.mxu0 0.0
    %749 = vmatpush1.msra.mxu0 %v714
    %750 = vmatprep.subr.mxu0 0.0
    %751 = vmatpush1.msra.mxu0 %v715
    %752 = vmatprep.subr.mxu0 0.0
    %753 = vmatpush1.msra.mxu0 %v716
    %754 = vmatprep.subr.mxu0 0.0
    %755 = vmatpush1.msra.mxu0 %v717
    %756 = vmatprep.subr.mxu0 0.0
    %757 = vmatpush1.msra.mxu0 %v718
    %758 = vmatprep.subr.mxu0 0.0
    %759 = vmatpush1.msra.mxu0 0.0
    %760 = vmatprep.subr.mxu0 0.0
    %761 = vmatpush1.msra.mxu0 0.0
    %762 = vmatprep.subr.mxu0 0.0
    %763 = vmatpush1.msra.mxu0 0.0
    %764 = vmatprep.subr.mxu0 0.0
    %765 = vmatpush1.msra.mxu0 0.0
    %766 = vmatprep.subr.mxu0 0.0
    %767 = vmatpush1.msra.mxu0 0.0
    %768 = vmatprep.subr.mxu0 0.0
    %769 = vmatpush1.msra.mxu0 0.0
    %770 = vmatprep.subr.mxu0 0.0
    %771 = vmatpush1.msra.mxu0 0.0
    %772 = vmatprep.subr.mxu0 0.0
    %773 = vmatpush1.msra.mxu0 0.0
    %774 = vmatprep.subr.mxu0 0.0
    %775 = vmatpush1.msra.mxu0 0.0
    %776 = vmatprep.subr.mxu0 0.0
    %777 = vmatpush1.msra.mxu0 0.0
    %778 = vmatprep.subr.mxu0 0.0
    %779 = vmatpush1.msra.mxu0 0.0
    %780 = vmatprep.subr.mxu0 0.0
    %781 = vmatpush1.msra.mxu0 0.0
    %782 = vmatprep.subr.mxu0 0.0
    %783 = vmatpush1.msra.mxu0 0.0
    %784 = vmatprep.subr.mxu0 0.0
    %785 = vmatpush1.msra.mxu0 0.0
    %786 = vmatprep.subr.mxu0 0.0
    %787 = vmatpush1.msra.mxu0 0.0
    %788 = vmatprep.subr.mxu0 0.0
    %789 = vmatpush1.msra.mxu0 0.0
    %790 = vmatprep.mubr.f32.mxu0 0.0
    %791 = vmatmul.mubr.f32.gmra.mrb[0].mxu0 %v701
    %v792 = vpop.f32.mrb[0].mxu0
    %v793 = vadd.f32 %v724, %v792
    %v794 = vpop.f32.mrb[0].mxu0
    %795 = vmatprep.mubr.f32.mxu0 0.0
    %796 = vmatmul.mubr.f32.gmra.mrb[0].mxu0 %v702
    %v797 = vpop.f32.mrb[0].mxu0
    %v798 = vadd.f32 %v724, %v797
    %v799 = vpop.f32.mrb[0].mxu0
    %800 = vdwg.mxu0
    %801 = vst [vmem:[%s10] sm:$0xff] %v793
    %802 = vst [vmem:[%s10 + $0x8] sm:$0xff] %v798
    %803 = vst [vmem:[%s11] sm:$0xff] %v693
    %804 = vst [vmem:[%s11 + $0x8] sm:$0xff] %v699
    // Predicated region
    $region46: #{noveld_output_heads.1} parent=1 // pred_check
      _
    $region47: #{noveld_output_heads.1} parent=1 // pred_check_branch
      %806 = sbr.rel (0) target = $region49
    $region48: #{noveld_output_heads.1} parent=1 // pred_region
      _
    $region49: #{noveld_output_heads.1} parent=1 // pred_fallthru
      _
    // Predicated region
    $region50: #{noveld_output_heads.1} parent=1 // pred_check
      _
    $region51: #{noveld_output_heads.1} parent=1 // pred_check_branch
      %808 = sbr.rel (0) target = $region53
    $region52: #{noveld_output_heads.1} parent=1 // pred_region
      _
    $region53: #{noveld_output_heads.1} parent=1 // pred_fallthru
      _
    // Predicated region
    $region54: #{noveld_output_heads.1} parent=1 // pred_check
      _
    $region55: #{noveld_output_heads.1} parent=1 // pred_check_branch
      %810 = sbr.rel (0) target = $region57
    $region56: #{noveld_output_heads.1} parent=1 // pred_region
      _
    $region57: #{noveld_output_heads.1} parent=1 // pred_fallthru
      _
    // Predicated region
    $region58: #{noveld_output_heads.1} parent=1 // pred_check
      _
    $region59: #{noveld_output_heads.1} parent=1 // pred_check_branch
      %812 = sbr.rel (0) target = $region61
    $region60: #{noveld_output_heads.1} parent=1 // pred_region
      _
    $region61: #{noveld_output_heads.1} parent=1 // pred_fallthru
      _
    // Predicated region
    $region62: #{noveld_output_heads.1} parent=1 // pred_check
      _
    $region63: #{noveld_output_heads.1} parent=1 // pred_check_branch
      %814 = sbr.rel (0) target = $region65
    $region64: #{noveld_output_heads.1} parent=1 // pred_region
      _
    $region65: #{noveld_output_heads.1} parent=1 // pred_fallthru
      _
    // Predicated region
    $region66: #{noveld_output_heads.1} parent=1 // pred_check
      _
    $region67: #{noveld_output_heads.1} parent=1 // pred_check_branch
      %816 = sbr.rel (0) target = $region69
    $region68: #{noveld_output_heads.1} parent=1 // pred_region
      _
    $region69: #{noveld_output_heads.1} parent=1 // pred_fallthru
      _
    // Predicated region
    $region70: #{noveld_output_heads.1} parent=1 // pred_check
      _
    $region71: #{noveld_output_heads.1} parent=1 // pred_check_branch
      %818 = sbr.rel (0) target = $region73
    $region72: #{noveld_output_heads.1} parent=1 // pred_region
      _
    $region73: #{noveld_output_heads.1} parent=1 // pred_fallthru
      _
    // Predicated region
    $region74: #{noveld_output_heads.1} parent=1 // pred_check
      _
    $region75: #{noveld_output_heads.1} parent=1 // pred_check_branch
      %820 = sbr.rel (0) target = $region77
    $region76: #{noveld_output_heads.1} parent=1 // pred_region
      _
    $region77: #{noveld_output_heads.1} parent=1 // pred_fallthru
      _
    %821 = vsyncpa [#allocation3], 1
    %822 = vsyncpa [#allocation5], 1

</llo_original>
